<compile_context>
chip_gen: v7x
topology: tpu7x:2x2x1
jax: 0.10.0
libtpu: 0.0.40
codegen_flags: <defaults>
</compile_context>

<pallas_src>
import jax
import jax.numpy as jnp
from jax.experimental import pallas as pl
from jax.experimental.pallas import tpu as pltpu

# ---------------- model hyper-parameters (small, consistent with the module) --
IN_DIM = 32
OUT_DIM = 9
HIDDEN_DIM = 128
D_MODEL = 64
N_HEADS = 4          # only affects the head split; with seq_len=1 attn == V
N_LAYERS = 2         # kernel body is unrolled for exactly 2 layers
LN_EPS = 1e-5
BATCH = 4

LANE = 128           # lane-dense slab / output width
BIAS_ROWS = 8        # biases / LN params pre-broadcast to one sublane group


# ---------------- static slab layout (computed once in Python) ----------------
# name -> (row_start, n_rows, lane_start, n_lanes)
def _build_layout():
    layout = {}
    r = 0
    # full-lane (128-wide) segments
    for name, rows in [("w1_0", D_MODEL), ("w1_1", D_MODEL), ("wout", D_MODEL),
                       ("b1_0", BIAS_ROWS), ("b1_1", BIAS_ROWS), ("bout", BIAS_ROWS)]:
        layout[name] = (r, rows, 0, LANE)
        r += rows
    base = r
    # 64-wide segments, balanced across the two lane halves (216 rows each)
    half0 = [("w2_0", HIDDEN_DIM), ("wattn1", D_MODEL),
             ("b2_0", BIAS_ROWS), ("b2_1", BIAS_ROWS), ("battn1", BIAS_ROWS)]
    half1 = [("w2_1", HIDDEN_DIM), ("we", IN_DIM),
             ("be", BIAS_ROWS), ("ln1w0", BIAS_ROWS), ("ln1b0", BIAS_ROWS),
             ("ln2w0", BIAS_ROWS), ("ln2b0", BIAS_ROWS),
             ("ln1w1", BIAS_ROWS), ("ln1b1", BIAS_ROWS)]
    c = base
    for name, rows in half0:
        layout[name] = (c, rows, 0, D_MODEL)
        c += rows
    rows0 = c - base
    c = base
    for name, rows in half1:
        layout[name] = (c, rows, D_MODEL, D_MODEL)
        c += rows
    rows1 = c - base
    return layout, base + max(rows0, rows1)


LAYOUT, TOTAL_ROWS = _build_layout()      # (432, 128) f32 slab  (~216 KiB)


# ------------------------------ kernel ----------------------------------------
def make_kernel(tile_b):
    """Kernel specialized for a static batch tile (layers fully unrolled)."""

    def seg(ref, name):
        r, n, c, w = LAYOUT[name]
        return ref[r:r + n, c:c + w]          # static slice of the slab ref

    def bias(ref, name):
        r, n, c, w = LAYOUT[name]
        rows = n if tile_b == n else 1        # exact-shape add for tile_b == 8,
        return ref[r:r + rows, c:c + w]       # sublane-broadcast otherwise

    def norm(v):
        # var = E[x^2] - E[x]^2 : the two cross-lane reductions are independent.
        mean = jnp.mean(v, axis=-1, keepdims=True)
        meansq = jnp.mean(v * v, axis=-1, keepdims=True)
        return (v - mean) * jax.lax.rsqrt(meansq - mean * mean + LN_EPS)

    def mxm(a, b):
        return jnp.dot(a, b, preferred_element_type=jnp.float32)

    def kernel(x_ref, p_ref, out_ref):
        # x_ref : (tile_b, IN_DIM)   p_ref : (TOTAL_ROWS, 128)   out_ref : (tile_b, 128)

        # embedding + layer-0 attention + residual, all folded into one matmul
        h = mxm(x_ref[...], seg(p_ref, "we")) + bias(p_ref, "be")
        h = norm(h) * bias(p_ref, "ln1w0") + bias(p_ref, "ln1b0")

        # layer-0 feed-forward + post-norm (dropout == identity in eval)
        ff = jnp.maximum(mxm(h, seg(p_ref, "w1_0")) + bias(p_ref, "b1_0"), 0.0)
        ff = mxm(ff, seg(p_ref, "w2_0")) + bias(p_ref, "b2_0")
        h = norm(h + ff) * bias(p_ref, "ln2w0") + bias(p_ref, "ln2b0")

        # layer-1 attention; residual folded into the weight (I + Wv@Wo)
        h = mxm(h, seg(p_ref, "wattn1")) + bias(p_ref, "battn1")
        h = norm(h) * bias(p_ref, "ln1w1") + bias(p_ref, "ln1b1")

        # layer-1 feed-forward; its LN2 affine is folded into the output head
        ff = jnp.maximum(mxm(h, seg(p_ref, "w1_1")) + bias(p_ref, "b1_1"), 0.0)
        ff = mxm(ff, seg(p_ref, "w2_1")) + bias(p_ref, "b2_1")
        h = norm(h + ff)

        # output head (lane-padded to 128): Wout' = diag(ln2w)@Wout, bout' folded
        out_ref[...] = mxm(h, seg(p_ref, "wout")) + bias(p_ref, "bout")

    return kernel


# ------------------------------ parameters ------------------------------------
def init_params(key):
    """Deterministic synthetic parameters in PyTorch weight shapes,
    pre-transposed to (in, out) so y = x @ W + b."""
    ks = iter(jax.random.split(key, 64))

    def rnd(shape, scale=0.05):
        return jax.random.normal(next(ks), shape, dtype=jnp.float32) * scale

    p = {}
    p["we"] = rnd((D_MODEL, IN_DIM)).T               # Linear(in_dim, d_model)
    p["be"] = rnd((1, D_MODEL))

    def stack(fn):
        return jnp.stack([fn() for _ in range(N_LAYERS)], axis=0)

    # MultiheadAttention in_proj (3d, d) -> (d, 3d); out_proj (d, d) -> (d, d)
    p["wqkv"] = stack(lambda: rnd((3 * D_MODEL, D_MODEL)).T)
    p["bqkv"] = stack(lambda: rnd((1, 3 * D_MODEL)))
    p["wo"] = stack(lambda: rnd((D_MODEL, D_MODEL)).T)
    p["bo"] = stack(lambda: rnd((1, D_MODEL)))
    # feed-forward linear1 (hid, d) -> (d, hid); linear2 (d, hid) -> (hid, d)
    p["w1"] = stack(lambda: rnd((HIDDEN_DIM, D_MODEL)).T)
    p["b1"] = stack(lambda: rnd((1, HIDDEN_DIM)))
    p["w2"] = stack(lambda: rnd((D_MODEL, HIDDEN_DIM)).T)
    p["b2"] = stack(lambda: rnd((1, D_MODEL)))
    # layernorm affine params (perturbed from 1/0 so the test is non-trivial)
    p["ln1w"] = stack(lambda: jnp.ones((1, D_MODEL), jnp.float32) + rnd((1, D_MODEL)))
    p["ln1b"] = stack(lambda: rnd((1, D_MODEL)))
    p["ln2w"] = stack(lambda: jnp.ones((1, D_MODEL), jnp.float32) + rnd((1, D_MODEL)))
    p["ln2b"] = stack(lambda: rnd((1, D_MODEL)))
    # output Linear(d_model, out_dim): W (out, d) -> (d, out)
    p["wout"] = rnd((OUT_DIM, D_MODEL)).T
    p["bout"] = rnd((1, OUT_DIM))
    return p


def pack_params(p):
    """Perform all exact analytic folds and pack everything into ONE slab."""
    hp = jax.lax.Precision.HIGHEST
    eye = jnp.eye(D_MODEL, dtype=jnp.float32)

    # seq_len == 1  =>  softmax == 1  =>  attn+residual = h @ (I + Wv@Wo) + (bv@Wo + bo)
    wv = p["wqkv"][:, :, 2 * D_MODEL:]                                   # (L, d, d)
    bv = p["bqkv"][:, :, 2 * D_MODEL:]                                   # (L, 1, d)
    wattn = jnp.einsum("lij,ljk->lik", wv, p["wo"], precision=hp) + eye  # I + Wv@Wo
    battn = jnp.einsum("lij,ljk->lik", bv, p["wo"], precision=hp) + p["bo"]

    # fold the embedding into layer-0's fused attention
    we_f = jnp.dot(p["we"], wattn[0], precision=hp)                      # (in, d)
    be_f = jnp.dot(p["be"], wattn[0], precision=hp) + battn[0]           # (1, d)

    # fold the LAST layer's LN2 affine into the output head
    lw, lb = p["ln2w"][N_LAYERS - 1], p["ln2b"][N_LAYERS - 1]            # (1, d)
    wout_f = lw.T * p["wout"]                                            # diag(ln2w)@Wout
    bout_f = jnp.dot(lb, p["wout"], precision=hp) + p["bout"]            # (1, out)

    # lane-pad the output head to 128
    wout_pad = jnp.zeros((D_MODEL, LANE), jnp.float32).at[:, :OUT_DIM].set(wout_f)
    bout_pad = jnp.zeros((1, LANE), jnp.float32).at[:, :OUT_DIM].set(bout_f)

    def bcast(b):
        return jnp.broadcast_to(b, (BIAS_ROWS, b.shape[-1]))

    slab = jnp.zeros((TOTAL_ROWS, LANE), jnp.float32)

    def put(s, name, val):
        r, n, c, w = LAYOUT[name]
        assert val.shape == (n, w), (name, val.shape, (n, w))
        return s.at[r:r + n, c:c + w].set(val)

    # full-lane segments
    slab = put(slab, "w1_0", p["w1"][0]); slab = put(slab, "b1_0", bcast(p["b1"][0]))
    slab = put(slab, "w1_1", p["w1"][1]); slab = put(slab, "b1_1", bcast(p["b1"][1]))
    slab = put(slab, "wout", wout_pad);   slab = put(slab, "bout", bcast(bout_pad))
    # lane-half segments
    slab = put(slab, "w2_0", p["w2"][0]); slab = put(slab, "b2_0", bcast(p["b2"][0]))
    slab = put(slab, "w2_1", p["w2"][1]); slab = put(slab, "b2_1", bcast(p["b2"][1]))
    slab = put(slab, "wattn1", wattn[1]); slab = put(slab, "battn1", bcast(battn[1]))
    slab = put(slab, "we", we_f);         slab = put(slab, "be", bcast(be_f))
    slab = put(slab, "ln1w0", bcast(p["ln1w"][0])); slab = put(slab, "ln1b0", bcast(p["ln1b"][0]))
    slab = put(slab, "ln2w0", bcast(p["ln2w"][0])); slab = put(slab, "ln2b0", bcast(p["ln2b"][0]))
    slab = put(slab, "ln1w1", bcast(p["ln1w"][1])); slab = put(slab, "ln1b1", bcast(p["ln1b"][1]))
    return slab


# ------------------------------ wrapper ---------------------------------------
@jax.jit
def transformer_forward(x, slab):
    b = x.shape[0]
    # batch tile: multiple of 8 sublanes, up to 256 rows for real serving batches
    tile_b = min(256, max(BIAS_ROWS, -(-b // 8) * 8))
    b_pad = -(-b // tile_b) * tile_b
    x_pad = jnp.zeros((b_pad, IN_DIM), jnp.float32).at[:b, :].set(x)

    out_pad = pl.pallas_call(
        make_kernel(tile_b),
        out_shape=jax.ShapeDtypeStruct((b_pad, LANE), jnp.float32),
        grid=(b_pad // tile_b,),
        in_specs=[
            pl.BlockSpec((tile_b, IN_DIM), lambda i: (i, 0)),      # x: tiled on batch
            pl.BlockSpec((TOTAL_ROWS, LANE), lambda i: (0, 0)),    # weights: VMEM-resident
        ],
        out_specs=pl.BlockSpec((tile_b, LANE), lambda i: (i, 0)),  # lane-dense output
        compiler_params=pltpu.CompilerParams(
            dimension_semantics=("parallel",)),                    # uses v7x's 2nd TC
    )(x_pad, slab)
    return out_pad[:b, :OUT_DIM]


# ------------------------------ reference -------------------------------------
def _mm(a, b):
    return jnp.dot(a, b, precision=jax.lax.Precision.HIGHEST)


def _layernorm_ref(x, w, b):
    mean = jnp.mean(x, axis=-1, keepdims=True)
    var = jnp.mean((x - mean) ** 2, axis=-1, keepdims=True)
    return (x - mean) * jax.lax.rsqrt(var + LN_EPS) * w + b


def reference_forward(x, p):
    """Pure-JAX reference mirroring the PyTorch eval-mode forward on the
    ORIGINAL (unfused) parameters."""
    h = _mm(x, p["we"]) + p["be"]
    for l in range(N_LAYERS):
        qkv = _mm(h, p["wqkv"][l]) + p["bqkv"][l]
        v = qkv[:, 2 * D_MODEL:]
        # seq_len == 1 (batch_first=True): softmax over one key is exactly 1,
        # so per-head context == per-head V regardless of Q/K and scaling.
        attn = _mm(v, p["wo"][l]) + p["bo"][l]
        h = _layernorm_ref(h + attn, p["ln1w"][l], p["ln1b"][l])
        ff = _mm(jnp.maximum(_mm(h, p["w1"][l]) + p["b1"][l], 0.0), p["w2"][l]) + p["b2"][l]
        h = _layernorm_ref(h + ff, p["ln2w"][l], p["ln2b"][l])
    return _mm(h, p["wout"]) + p["bout"]


if __name__ == "__main__":
    key = jax.random.PRNGKey(0)
    k_x, k_p = jax.random.split(key)
    x = jax.random.normal(k_x, (BATCH, IN_DIM), dtype=jnp.float32)
    params = init_params(k_p)
    slab = pack_params(params)

    out = transformer_forward(x, slab)
    out = jax.block_until_ready(out)

    ref = reference_forward(x, params)
    assert out.shape == (BATCH, OUT_DIM)
    err = float(jnp.max(jnp.abs(out - ref)))
    assert jnp.allclose(out, ref, atol=5e-4, rtol=5e-4), f"max abs err {err}"
    print("KERNEL_OK")
</pallas_src>

<mosaic_0001>
module attributes {stable_mosaic.version = 11 : i64} {
  func.func @kernel(%arg0: i32, %arg1: memref<8x32xf32, #tpu.memory_space<vmem>>, %arg2: memref<432x128xf32, #tpu.memory_space<vmem>>, %arg3: memref<8x128xf32, #tpu.memory_space<vmem>>) attributes {dimension_semantics = [#tpu.dimension_semantics<parallel>], iteration_bounds = array<i64: 1>, scalar_prefetch = 0 : i64, scratch_operands = 0 : i64, tpu.core_type = #tpu.core_type<tc>, window_params = [{transform_indices = @transform_0, window_bounds = array<i64: 8, 32>}, {pipeline_mode = #tpu.pipeline_mode<synchronous>, transform_indices = @transform_1, window_bounds = array<i64: 432, 128>}, {transform_indices = @transform_2, window_bounds = array<i64: 8, 128>}]} {
    %c0 = arith.constant 0 : index
    %c0_0 = arith.constant 0 : index
    %0 = vector.load %arg1[%c0, %c0_0] : memref<8x32xf32, #tpu.memory_space<vmem>>, vector<8x32xf32>
    %c344 = arith.constant 344 : index
    %c64 = arith.constant 64 : index
    %1 = vector.load %arg2[%c344, %c64] : memref<432x128xf32, #tpu.memory_space<vmem>>, vector<32x64xf32>
    %cst = arith.constant dense<0.000000e+00> : vector<8x64xf32>
    %2 = tpu.matmul %0, %1, %cst {dimension_numbers = #tpu.dot_dimension_numbers<[1], [0], [0], [1], [0, 0, 1, 1], [], []>} : vector<8x32xf32>, vector<32x64xf32>, vector<8x64xf32> -> vector<8x64xf32>
    %c376 = arith.constant 376 : index
    %c64_1 = arith.constant 64 : index
    %3 = vector.load %arg2[%c376, %c64_1] : memref<432x128xf32, #tpu.memory_space<vmem>>, vector<8x64xf32>
    %4 = arith.addf %2, %3 : vector<8x64xf32>
    %cst_2 = arith.constant dense<0.000000e+00> : vector<8xf32>
    %5 = vector.multi_reduction <add>, %4, %cst_2 [1] : vector<8x64xf32> to vector<8xf32>
    %6 = vector.shape_cast %5 : vector<8xf32> to vector<8x1xf32>
    %cst_3 = arith.constant 6.400000e+01 : f32
    %7 = vector.broadcast %cst_3 : f32 to vector<8x1xf32>
    %8 = arith.divf %6, %7 : vector<8x1xf32>
    %9 = arith.mulf %4, %4 : vector<8x64xf32>
    %cst_4 = arith.constant dense<0.000000e+00> : vector<8xf32>
    %10 = vector.multi_reduction <add>, %9, %cst_4 [1] : vector<8x64xf32> to vector<8xf32>
    %11 = vector.shape_cast %10 : vector<8xf32> to vector<8x1xf32>
    %cst_5 = arith.constant 6.400000e+01 : f32
    %12 = vector.broadcast %cst_5 : f32 to vector<8x1xf32>
    %13 = arith.divf %11, %12 : vector<8x1xf32>
    %14 = vector.broadcast %8 : vector<8x1xf32> to vector<8x64xf32>
    %15 = arith.subf %4, %14 : vector<8x64xf32>
    %16 = arith.mulf %8, %8 : vector<8x1xf32>
    %17 = arith.subf %13, %16 : vector<8x1xf32>
    %cst_6 = arith.constant 9.99999974E-6 : f32
    %18 = vector.broadcast %cst_6 : f32 to vector<8x1xf32>
    %19 = arith.addf %17, %18 : vector<8x1xf32>
    %20 = math.rsqrt %19 : vector<8x1xf32>
    %21 = vector.broadcast %20 : vector<8x1xf32> to vector<8x64xf32>
    %22 = arith.mulf %15, %21 : vector<8x64xf32>
    %c384 = arith.constant 384 : index
    %c64_7 = arith.constant 64 : index
    %23 = vector.load %arg2[%c384, %c64_7] : memref<432x128xf32, #tpu.memory_space<vmem>>, vector<8x64xf32>
    %24 = arith.mulf %22, %23 : vector<8x64xf32>
    %c392 = arith.constant 392 : index
    %c64_8 = arith.constant 64 : index
    %25 = vector.load %arg2[%c392, %c64_8] : memref<432x128xf32, #tpu.memory_space<vmem>>, vector<8x64xf32>
    %26 = arith.addf %24, %25 : vector<8x64xf32>
    %c0_9 = arith.constant 0 : index
    %c0_10 = arith.constant 0 : index
    %27 = vector.load %arg2[%c0_9, %c0_10] : memref<432x128xf32, #tpu.memory_space<vmem>>, vector<64x128xf32>
    %cst_11 = arith.constant dense<0.000000e+00> : vector<8x128xf32>
    %28 = tpu.matmul %26, %27, %cst_11 {dimension_numbers = #tpu.dot_dimension_numbers<[1], [0], [0], [1], [0, 0, 1, 1], [], []>} : vector<8x64xf32>, vector<64x128xf32>, vector<8x128xf32> -> vector<8x128xf32>
    %c192 = arith.constant 192 : index
    %c0_12 = arith.constant 0 : index
    %29 = vector.load %arg2[%c192, %c0_12] : memref<432x128xf32, #tpu.memory_space<vmem>>, vector<8x128xf32>
    %30 = arith.addf %28, %29 : vector<8x128xf32>
    %cst_13 = arith.constant 0.000000e+00 : f32
    %31 = vector.broadcast %cst_13 : f32 to vector<8x128xf32>
    %32 = arith.maximumf %30, %31 : vector<8x128xf32>
    %c216 = arith.constant 216 : index
    %c0_14 = arith.constant 0 : index
    %33 = vector.load %arg2[%c216, %c0_14] : memref<432x128xf32, #tpu.memory_space<vmem>>, vector<128x64xf32>
    %cst_15 = arith.constant dense<0.000000e+00> : vector<8x64xf32>
    %34 = tpu.matmul %32, %33, %cst_15 {dimension_numbers = #tpu.dot_dimension_numbers<[1], [0], [0], [1], [0, 0, 1, 1], [], []>} : vector<8x128xf32>, vector<128x64xf32>, vector<8x64xf32> -> vector<8x64xf32>
    %c408 = arith.constant 408 : index
    %c0_16 = arith.constant 0 : index
    %35 = vector.load %arg2[%c408, %c0_16] : memref<432x128xf32, #tpu.memory_space<vmem>>, vector<8x64xf32>
    %36 = arith.addf %34, %35 : vector<8x64xf32>
    %37 = arith.addf %26, %36 : vector<8x64xf32>
    %cst_17 = arith.constant dense<0.000000e+00> : vector<8xf32>
    %38 = vector.multi_reduction <add>, %37, %cst_17 [1] : vector<8x64xf32> to vector<8xf32>
    %39 = vector.shape_cast %38 : vector<8xf32> to vector<8x1xf32>
    %cst_18 = arith.constant 6.400000e+01 : f32
    %40 = vector.broadcast %cst_18 : f32 to vector<8x1xf32>
    %41 = arith.divf %39, %40 : vector<8x1xf32>
    %42 = arith.mulf %37, %37 : vector<8x64xf32>
    %cst_19 = arith.constant dense<0.000000e+00> : vector<8xf32>
    %43 = vector.multi_reduction <add>, %42, %cst_19 [1] : vector<8x64xf32> to vector<8xf32>
    %44 = vector.shape_cast %43 : vector<8xf32> to vector<8x1xf32>
    %cst_20 = arith.constant 6.400000e+01 : f32
    %45 = vector.broadcast %cst_20 : f32 to vector<8x1xf32>
    %46 = arith.divf %44, %45 : vector<8x1xf32>
    %47 = vector.broadcast %41 : vector<8x1xf32> to vector<8x64xf32>
    %48 = arith.subf %37, %47 : vector<8x64xf32>
    %49 = arith.mulf %41, %41 : vector<8x1xf32>
    %50 = arith.subf %46, %49 : vector<8x1xf32>
    %cst_21 = arith.constant 9.99999974E-6 : f32
    %51 = vector.broadcast %cst_21 : f32 to vector<8x1xf32>
    %52 = arith.addf %50, %51 : vector<8x1xf32>
    %53 = math.rsqrt %52 : vector<8x1xf32>
    %54 = vector.broadcast %53 : vector<8x1xf32> to vector<8x64xf32>
    %55 = arith.mulf %48, %54 : vector<8x64xf32>
    %c400 = arith.constant 400 : index
    %c64_22 = arith.constant 64 : index
    %56 = vector.load %arg2[%c400, %c64_22] : memref<432x128xf32, #tpu.memory_space<vmem>>, vector<8x64xf32>
    %57 = arith.mulf %55, %56 : vector<8x64xf32>
    %c408_23 = arith.constant 408 : index
    %c64_24 = arith.constant 64 : index
    %58 = vector.load %arg2[%c408_23, %c64_24] : memref<432x128xf32, #tpu.memory_space<vmem>>, vector<8x64xf32>
    %59 = arith.addf %57, %58 : vector<8x64xf32>
    %c344_25 = arith.constant 344 : index
    %c0_26 = arith.constant 0 : index
    %60 = vector.load %arg2[%c344_25, %c0_26] : memref<432x128xf32, #tpu.memory_space<vmem>>, vector<64x64xf32>
    %cst_27 = arith.constant dense<0.000000e+00> : vector<8x64xf32>
    %61 = tpu.matmul %59, %60, %cst_27 {dimension_numbers = #tpu.dot_dimension_numbers<[1], [0], [0], [1], [0, 0, 1, 1], [], []>} : vector<8x64xf32>, vector<64x64xf32>, vector<8x64xf32> -> vector<8x64xf32>
    %c424 = arith.constant 424 : index
    %c0_28 = arith.constant 0 : index
    %62 = vector.load %arg2[%c424, %c0_28] : memref<432x128xf32, #tpu.memory_space<vmem>>, vector<8x64xf32>
    %63 = arith.addf %61, %62 : vector<8x64xf32>
    %cst_29 = arith.constant dense<0.000000e+00> : vector<8xf32>
    %64 = vector.multi_reduction <add>, %63, %cst_29 [1] : vector<8x64xf32> to vector<8xf32>
    %65 = vector.shape_cast %64 : vector<8xf32> to vector<8x1xf32>
    %cst_30 = arith.constant 6.400000e+01 : f32
    %66 = vector.broadcast %cst_30 : f32 to vector<8x1xf32>
    %67 = arith.divf %65, %66 : vector<8x1xf32>
    %68 = arith.mulf %63, %63 : vector<8x64xf32>
    %cst_31 = arith.constant dense<0.000000e+00> : vector<8xf32>
    %69 = vector.multi_reduction <add>, %68, %cst_31 [1] : vector<8x64xf32> to vector<8xf32>
    %70 = vector.shape_cast %69 : vector<8xf32> to vector<8x1xf32>
    %cst_32 = arith.constant 6.400000e+01 : f32
    %71 = vector.broadcast %cst_32 : f32 to vector<8x1xf32>
    %72 = arith.divf %70, %71 : vector<8x1xf32>
    %73 = vector.broadcast %67 : vector<8x1xf32> to vector<8x64xf32>
    %74 = arith.subf %63, %73 : vector<8x64xf32>
    %75 = arith.mulf %67, %67 : vector<8x1xf32>
    %76 = arith.subf %72, %75 : vector<8x1xf32>
    %cst_33 = arith.constant 9.99999974E-6 : f32
    %77 = vector.broadcast %cst_33 : f32 to vector<8x1xf32>
    %78 = arith.addf %76, %77 : vector<8x1xf32>
    %79 = math.rsqrt %78 : vector<8x1xf32>
    %80 = vector.broadcast %79 : vector<8x1xf32> to vector<8x64xf32>
    %81 = arith.mulf %74, %80 : vector<8x64xf32>
    %c416 = arith.constant 416 : index
    %c64_34 = arith.constant 64 : index
    %82 = vector.load %arg2[%c416, %c64_34] : memref<432x128xf32, #tpu.memory_space<vmem>>, vector<8x64xf32>
    %83 = arith.mulf %81, %82 : vector<8x64xf32>
    %c424_35 = arith.constant 424 : index
    %c64_36 = arith.constant 64 : index
    %84 = vector.load %arg2[%c424_35, %c64_36] : memref<432x128xf32, #tpu.memory_space<vmem>>, vector<8x64xf32>
    %85 = arith.addf %83, %84 : vector<8x64xf32>
    %c64_37 = arith.constant 64 : index
    %c0_38 = arith.constant 0 : index
    %86 = vector.load %arg2[%c64_37, %c0_38] : memref<432x128xf32, #tpu.memory_space<vmem>>, vector<64x128xf32>
    %cst_39 = arith.constant dense<0.000000e+00> : vector<8x128xf32>
    %87 = tpu.matmul %85, %86, %cst_39 {dimension_numbers = #tpu.dot_dimension_numbers<[1], [0], [0], [1], [0, 0, 1, 1], [], []>} : vector<8x64xf32>, vector<64x128xf32>, vector<8x128xf32> -> vector<8x128xf32>
    %c200 = arith.constant 200 : index
    %c0_40 = arith.constant 0 : index
    %88 = vector.load %arg2[%c200, %c0_40] : memref<432x128xf32, #tpu.memory_space<vmem>>, vector<8x128xf32>
    %89 = arith.addf %87, %88 : vector<8x128xf32>
    %cst_41 = arith.constant 0.000000e+00 : f32
    %90 = vector.broadcast %cst_41 : f32 to vector<8x128xf32>
    %91 = arith.maximumf %89, %90 : vector<8x128xf32>
    %c216_42 = arith.constant 216 : index
    %c64_43 = arith.constant 64 : index
    %92 = vector.load %arg2[%c216_42, %c64_43] : memref<432x128xf32, #tpu.memory_space<vmem>>, vector<128x64xf32>
    %cst_44 = arith.constant dense<0.000000e+00> : vector<8x64xf32>
    %93 = tpu.matmul %91, %92, %cst_44 {dimension_numbers = #tpu.dot_dimension_numbers<[1], [0], [0], [1], [0, 0, 1, 1], [], []>} : vector<8x128xf32>, vector<128x64xf32>, vector<8x64xf32> -> vector<8x64xf32>
    %c416_45 = arith.constant 416 : index
    %c0_46 = arith.constant 0 : index
    %94 = vector.load %arg2[%c416_45, %c0_46] : memref<432x128xf32, #tpu.memory_space<vmem>>, vector<8x64xf32>
    %95 = arith.addf %93, %94 : vector<8x64xf32>
    %96 = arith.addf %85, %95 : vector<8x64xf32>
    %cst_47 = arith.constant dense<0.000000e+00> : vector<8xf32>
    %97 = vector.multi_reduction <add>, %96, %cst_47 [1] : vector<8x64xf32> to vector<8xf32>
    %98 = vector.shape_cast %97 : vector<8xf32> to vector<8x1xf32>
    %cst_48 = arith.constant 6.400000e+01 : f32
    %99 = vector.broadcast %cst_48 : f32 to vector<8x1xf32>
    %100 = arith.divf %98, %99 : vector<8x1xf32>
    %101 = arith.mulf %96, %96 : vector<8x64xf32>
    %cst_49 = arith.constant dense<0.000000e+00> : vector<8xf32>
    %102 = vector.multi_reduction <add>, %101, %cst_49 [1] : vector<8x64xf32> to vector<8xf32>
    %103 = vector.shape_cast %102 : vector<8xf32> to vector<8x1xf32>
    %cst_50 = arith.constant 6.400000e+01 : f32
    %104 = vector.broadcast %cst_50 : f32 to vector<8x1xf32>
    %105 = arith.divf %103, %104 : vector<8x1xf32>
    %106 = vector.broadcast %100 : vector<8x1xf32> to vector<8x64xf32>
    %107 = arith.subf %96, %106 : vector<8x64xf32>
    %108 = arith.mulf %100, %100 : vector<8x1xf32>
    %109 = arith.subf %105, %108 : vector<8x1xf32>
    %cst_51 = arith.constant 9.99999974E-6 : f32
    %110 = vector.broadcast %cst_51 : f32 to vector<8x1xf32>
    %111 = arith.addf %109, %110 : vector<8x1xf32>
    %112 = math.rsqrt %111 : vector<8x1xf32>
    %113 = vector.broadcast %112 : vector<8x1xf32> to vector<8x64xf32>
    %114 = arith.mulf %107, %113 : vector<8x64xf32>
    %c128 = arith.constant 128 : index
    %c0_52 = arith.constant 0 : index
    %115 = vector.load %arg2[%c128, %c0_52] : memref<432x128xf32, #tpu.memory_space<vmem>>, vector<64x128xf32>
    %cst_53 = arith.constant dense<0.000000e+00> : vector<8x128xf32>
    %116 = tpu.matmul %114, %115, %cst_53 {dimension_numbers = #tpu.dot_dimension_numbers<[1], [0], [0], [1], [0, 0, 1, 1], [], []>} : vector<8x64xf32>, vector<64x128xf32>, vector<8x128xf32> -> vector<8x128xf32>
    %c208 = arith.constant 208 : index
    %c0_54 = arith.constant 0 : index
    %117 = vector.load %arg2[%c208, %c0_54] : memref<432x128xf32, #tpu.memory_space<vmem>>, vector<8x128xf32>
    %118 = arith.addf %116, %117 : vector<8x128xf32>
    %c0_55 = arith.constant 0 : index
    %c0_56 = arith.constant 0 : index
    %119 = vector.load %arg3[%c0_55, %c0_56] : memref<8x128xf32, #tpu.memory_space<vmem>>, vector<8x128xf32>
    tpu.vector_store %arg3[%c0_55, %c0_56], %118 {strides = array<i32>} : memref<8x128xf32, #tpu.memory_space<vmem>>, vector<8x128xf32>,
    return
  }
  func.func @transform_0(%arg0: i32) -> (i32, i32) {
    %c0_i32 = arith.constant 0 : i32
    %c0_i32_0 = arith.constant 0 : i32
    return %arg0, %c0_i32 : i32, i32
  }
  func.func @transform_1(%arg0: i32) -> (i32, i32) {
    %c0_i32 = arith.constant 0 : i32
    %c0_i32_0 = arith.constant 0 : i32
    %c0_i32_1 = arith.constant 0 : i32
    return %c0_i32, %c0_i32_0 : i32, i32
  }
  func.func @transform_2(%arg0: i32) -> (i32, i32) {
    %c0_i32 = arith.constant 0 : i32
    %c0_i32_0 = arith.constant 0 : i32
    return %arg0, %c0_i32 : i32, i32
  }
}

</mosaic_0001>

<llo_original>
// kernel: transformer_forward.1
$region0: #{transformer_forward.1}
  #allocation0 [shape = 'u32[]', space=smem, size = 0x4, offset = 0x4, fixed_abs, tag = 'smem constant byte address 0x4 - core index']
  #allocation1 [shape = 'u32[144,128]{1,0:T(1,128)}', space=vmem, size = 0x12000, scoped, tag = 'internal scratch']
  %s0 = inlined_call_operand.vmem [shape: f32[8,32], index: 0, kind: input, shape index: {}]
  %s1 = inlined_call_operand.hbm [shape: f32[432,128], index: 1, kind: input, shape index: {}]
  %s2 = inlined_call_operand.vmem [shape: f32[8,128], index: 2, kind: output, shape index: {}]
  %s3 = sld [smem:[#allocation0]]
  $region22: #{transformer_forward.1} parent=0
    _
  %s5 = ssub.s32 1, %s3
  %s6 = scalar_select 0, %s5, %s3
  $region1: #{transformer_forward.1} parent=0
    #allocation2 [shape = 'u8[221184]{0}', space=vmem, size = 0x36000, scoped, tag = 'input window, operand 1, single buffered']
    #allocation3 [shape = 's32[1]{0}', space=sflag, size = 0x4, scoped, tag = 'scoped memory for transformer_forward.1']
    %7 = vsyncpa [#allocation3], 0
    // Predicated region
    $region2: #{transformer_forward.1} parent=1 // pred_check
      _
    $region3: #{transformer_forward.1} parent=1 // pred_check_branch
      %9 = sbr.rel (0) target = $region5
    $region4: #{transformer_forward.1} parent=1 // pred_region
      _
    $region5: #{transformer_forward.1} parent=1 // pred_fallthru
      _
    // Predicated region
    $region6: #{transformer_forward.1} parent=1 // pred_check
      _
    $region7: #{transformer_forward.1} parent=1 // pred_check_branch
      %11 = sbr.rel (0) target = $region9
    $region8: #{transformer_forward.1} parent=1 // pred_region
      %s13 = ssub.s32 6912, 6912
      %14 = vsyncadd [#allocation3], %s13
      %s15 = sshll.u32 [#allocation2], 4
      %s16 = int_to_ptr.vmem [resolvable:$true] %s15
      %21 = dma.hbm_to_vmem [thread:$0]  %s1, 6912, %s16, [#allocation3], 128, 128, 8
    $region9: #{transformer_forward.1} parent=1 // pred_fallthru
      _
    // Predicated region
    $region10: #{transformer_forward.1} parent=1 // pred_check
      _
    $region11: #{transformer_forward.1} parent=1 // pred_check_branch
      %23 = sbr.rel (0) target = $region13
    $region12: #{transformer_forward.1} parent=1 // pred_region
      %24 = dma.done [#allocation3], 6912
    $region13: #{transformer_forward.1} parent=1 // pred_fallthru
      _
    %v25 = vld [vmem:[%s0] sm:$0xff]
    %v26 = vld [vmem:[#allocation2 + $0x158] sm:$0xff]
    %v27 = vld [vmem:[#allocation2 + $0x160] sm:$0xff]
    %v28 = vld [vmem:[#allocation2 + $0x168] sm:$0xff]
    %v29 = vld [vmem:[#allocation2 + $0x170] sm:$0xff]
    %v30 = vld [vmem:[#allocation2 + $0x178] sm:$0xff]
    %35 = vrot.lane.b32.xlu0 %v26, 64
    %v36 = vpop.permute.xlu0 %35
    %37 = vrot.lane.b32.xlu0 %v27, 64
    %v38 = vpop.permute.xlu0 %37
    %39 = vrot.lane.b32.xlu0 %v28, 64
    %v40 = vpop.permute.xlu0 %39
    %41 = vrot.lane.b32.xlu0 %v29, 64
    %v42 = vpop.permute.xlu0 %41
    %48 = vrot.lane.b32.xlu0 %v30, 64
    %v49 = vpop.permute.xlu0 %48
    %vm51 = vcmask 261120
    %v53 = vsel %vm51, %v25, 0
    %55 = vmatprep.subr.mxu0 0.0
    %56 = vmatpush1.msra.mxu0 %v36
    %57 = vmatprep.subr.mxu0 0.0
    %58 = vmatpush1.msra.mxu0 %v38
    %59 = vmatprep.subr.mxu0 0.0
    %60 = vmatpush1.msra.mxu0 %v40
    %61 = vmatprep.subr.mxu0 0.0
    %62 = vmatpush1.msra.mxu0 %v42
    %63 = vmatprep.subr.mxu0 0.0
    %64 = vmatpush1.msra.mxu0 0.0
    %65 = vmatprep.subr.mxu0 0.0
    %66 = vmatpush1.msra.mxu0 0.0
    %67 = vmatprep.subr.mxu0 0.0
    %68 = vmatpush1.msra.mxu0 0.0
    %69 = vmatprep.subr.mxu0 0.0
    %70 = vmatpush1.msra.mxu0 0.0
    %71 = vmatprep.subr.mxu0 0.0
    %72 = vmatpush1.msra.mxu0 0.0
    %73 = vmatprep.subr.mxu0 0.0
    %74 = vmatpush1.msra.mxu0 0.0
    %75 = vmatprep.subr.mxu0 0.0
    %76 = vmatpush1.msra.mxu0 0.0
    %77 = vmatprep.subr.mxu0 0.0
    %78 = vmatpush1.msra.mxu0 0.0
    %79 = vmatprep.subr.mxu0 0.0
    %80 = vmatpush1.msra.mxu0 0.0
    %81 = vmatprep.subr.mxu0 0.0
    %82 = vmatpush1.msra.mxu0 0.0
    %83 = vmatprep.subr.mxu0 0.0
    %84 = vmatpush1.msra.mxu0 0.0
    %85 = vmatprep.subr.mxu0 0.0
    %86 = vmatpush1.msra.mxu0 0.0
    %87 = vmatprep.subr.mxu0 0.0
    %88 = vmatpush1.msra.mxu0 0.0
    %89 = vmatprep.subr.mxu0 0.0
    %90 = vmatpush1.msra.mxu0 0.0
    %91 = vmatprep.subr.mxu0 0.0
    %92 = vmatpush1.msra.mxu0 0.0
    %93 = vmatprep.subr.mxu0 0.0
    %94 = vmatpush1.msra.mxu0 0.0
    %95 = vmatprep.subr.mxu0 0.0
    %96 = vmatpush1.msra.mxu0 0.0
    %97 = vmatprep.subr.mxu0 0.0
    %98 = vmatpush1.msra.mxu0 0.0
    %99 = vmatprep.subr.mxu0 0.0
    %100 = vmatpush1.msra.mxu0 0.0
    %101 = vmatprep.subr.mxu0 0.0
    %102 = vmatpush1.msra.mxu0 0.0
    %103 = vmatprep.subr.mxu0 0.0
    %104 = vmatpush1.msra.mxu0 0.0
    %105 = vmatprep.subr.mxu0 0.0
    %106 = vmatpush1.msra.mxu0 0.0
    %107 = vmatprep.subr.mxu0 0.0
    %108 = vmatpush1.msra.mxu0 0.0
    %109 = vmatprep.subr.mxu0 0.0
    %110 = vmatpush1.msra.mxu0 0.0
    %111 = vmatprep.subr.mxu0 0.0
    %112 = vmatpush1.msra.mxu0 0.0
    %113 = vmatprep.subr.mxu0 0.0
    %114 = vmatpush1.msra.mxu0 0.0
    %115 = vmatprep.subr.mxu0 0.0
    %116 = vmatpush1.msra.mxu0 0.0
    %117 = vmatprep.subr.mxu0 0.0
    %118 = vmatpush1.msra.mxu0 0.0
    %119 = vmatprep.mubr.f32.mxu0 0.0
    %120 = vmatmul.mubr.f32.gmra.mrb[0].mxu0 %v53
    %v121 = vpop.f32.mrb[0].mxu0
    %v122 = vadd.f32 %v49, %v121
    %v123 = vpop.f32.mrb[0].mxu0
    %124 = vdwg.mxu0
    %vm125 = vcmask 523264
    %v126 = vsel %vm125, %v122, 0.0
    %127 = vadd.xlane.f32.xlu0 %v126
    %v128 = vpop.xlane.xlu0 %127
    %v129 = vrcp.pop 64.0
    %v130 = vmul.f32 %v128, %v129
    %v131 = vmul.f32 %v122, %v122
    %v132 = vsel %vm125, %v131, 0.0
    %133 = vadd.xlane.f32.xlu0 %v132
    %v134 = vpop.xlane.xlu0 %133
    %v135 = vmul.f32 %v134, %v129
    %v136 = vsub.f32 %v122, %v130
    %v137 = vmul.f32 %v130, %v130
    %v138 = vsub.f32 %v135, %v137
    %v139 = vadd.f32 %v138, 1e-05
    %v140 = vrsqrt.pop %v139
    %v141 = vmul.f32 %v136, %v140
    %v142 = vld [vmem:[#allocation2 + $0x180] sm:$0xff]
    %144 = vrot.lane.b32.xlu0 %v142, 64
    %v145 = vpop.permute.xlu0 %144
    %v147 = vmul.f32 %v141, %v145
    %v148 = vld [vmem:[#allocation2 + $0x188] sm:$0xff]
    %150 = vrot.lane.b32.xlu0 %v148, 64
    %v151 = vpop.permute.xlu0 %150
    %v153 = vadd.f32 %v147, %v151
    %v154 = vld [vmem:[#allocation2] sm:$0xff]
    %v155 = vld [vmem:[#allocation2 + $0x8] sm:$0xff]
    %v156 = vld [vmem:[#allocation2 + $0x10] sm:$0xff]
    %v157 = vld [vmem:[#allocation2 + $0x18] sm:$0xff]
    %v158 = vld [vmem:[#allocation2 + $0x20] sm:$0xff]
    %v159 = vld [vmem:[#allocation2 + $0x28] sm:$0xff]
    %v160 = vld [vmem:[#allocation2 + $0x30] sm:$0xff]
    %v161 = vld [vmem:[#allocation2 + $0x38] sm:$0xff]
    %v162 = vld [vmem:[#allocation2 + $0xc0] sm:$0xff]
    %v164 = vsel %vm125, %v153, 0
    %166 = vmatprep.subr.mxu0 0.0
    %167 = vmatpush1.msra.mxu0 %v154
    %168 = vmatprep.subr.mxu0 0.0
    %169 = vmatpush1.msra.mxu0 %v155
    %170 = vmatprep.subr.mxu0 0.0
    %171 = vmatpush1.msra.mxu0 %v156
    %172 = vmatprep.subr.mxu0 0.0
    %173 = vmatpush1.msra.mxu0 %v157
    %174 = vmatprep.subr.mxu0 0.0
    %175 = vmatpush1.msra.mxu0 %v158
    %176 = vmatprep.subr.mxu0 0.0
    %177 = vmatpush1.msra.mxu0 %v159
    %178 = vmatprep.subr.mxu0 0.0
    %179 = vmatpush1.msra.mxu0 %v160
    %180 = vmatprep.subr.mxu0 0.0
    %181 = vmatpush1.msra.mxu0 %v161
    %182 = vmatprep.subr.mxu0 0.0
    %183 = vmatpush1.msra.mxu0 0.0
    %184 = vmatprep.subr.mxu0 0.0
    %185 = vmatpush1.msra.mxu0 0.0
    %186 = vmatprep.subr.mxu0 0.0
    %187 = vmatpush1.msra.mxu0 0.0
    %188 = vmatprep.subr.mxu0 0.0
    %189 = vmatpush1.msra.mxu0 0.0
    %190 = vmatprep.subr.mxu0 0.0
    %191 = vmatpush1.msra.mxu0 0.0
    %192 = vmatprep.subr.mxu0 0.0
    %193 = vmatpush1.msra.mxu0 0.0
    %194 = vmatprep.subr.mxu0 0.0
    %195 = vmatpush1.msra.mxu0 0.0
    %196 = vmatprep.subr.mxu0 0.0
    %197 = vmatpush1.msra.mxu0 0.0
    %198 = vmatprep.subr.mxu0 0.0
    %199 = vmatpush1.msra.mxu0 0.0
    %200 = vmatprep.subr.mxu0 0.0
    %201 = vmatpush1.msra.mxu0 0.0
    %202 = vmatprep.subr.mxu0 0.0
    %203 = vmatpush1.msra.mxu0 0.0
    %204 = vmatprep.subr.mxu0 0.0
    %205 = vmatpush1.msra.mxu0 0.0
    %206 = vmatprep.subr.mxu0 0.0
    %207 = vmatpush1.msra.mxu0 0.0
    %208 = vmatprep.subr.mxu0 0.0
    %209 = vmatpush1.msra.mxu0 0.0
    %210 = vmatprep.subr.mxu0 0.0
    %211 = vmatpush1.msra.mxu0 0.0
    %212 = vmatprep.subr.mxu0 0.0
    %213 = vmatpush1.msra.mxu0 0.0
    %214 = vmatprep.subr.mxu0 0.0
    %215 = vmatpush1.msra.mxu0 0.0
    %216 = vmatprep.subr.mxu0 0.0
    %217 = vmatpush1.msra.mxu0 0.0
    %218 = vmatprep.subr.mxu0 0.0
    %219 = vmatpush1.msra.mxu0 0.0
    %220 = vmatprep.subr.mxu0 0.0
    %221 = vmatpush1.msra.mxu0 0.0
    %222 = vmatprep.subr.mxu0 0.0
    %223 = vmatpush1.msra.mxu0 0.0
    %224 = vmatprep.subr.mxu0 0.0
    %225 = vmatpush1.msra.mxu0 0.0
    %226 = vmatprep.subr.mxu0 0.0
    %227 = vmatpush1.msra.mxu0 0.0
    %228 = vmatprep.subr.mxu0 0.0
    %229 = vmatpush1.msra.mxu0 0.0
    %230 = vmatprep.mubr.f32.mxu0 0.0
    %231 = vmatmul.mubr.f32.gmra.mrb[0].mxu0 %v164
    %v232 = vpop.f32.mrb[0].mxu0
    %v233 = vadd.f32 %v162, %v232
    %v234 = vpop.f32.mrb[0].mxu0
    %235 = vdwg.mxu0
    %v236 = vmax.f32 %v233, 0.0
    %v237 = vld [vmem:[#allocation2 + $0xd8] sm:$0xff]
    %v238 = vld [vmem:[#allocation2 + $0xe0] sm:$0xff]
    %v239 = vld [vmem:[#allocation2 + $0xe8] sm:$0xff]
    %v240 = vld [vmem:[#allocation2 + $0xf0] sm:$0xff]
    %v241 = vld [vmem:[#allocation2 + $0xf8] sm:$0xff]
    %v242 = vld [vmem:[#allocation2 + $0x100] sm:$0xff]
    %v243 = vld [vmem:[#allocation2 + $0x108] sm:$0xff]
    %v244 = vld [vmem:[#allocation2 + $0x110] sm:$0xff]
    %v245 = vld [vmem:[#allocation2 + $0x118] sm:$0xff]
    %v246 = vld [vmem:[#allocation2 + $0x120] sm:$0xff]
    %v247 = vld [vmem:[#allocation2 + $0x128] sm:$0xff]
    %v248 = vld [vmem:[#allocation2 + $0x130] sm:$0xff]
    %v249 = vld [vmem:[#allocation2 + $0x138] sm:$0xff]
    %v250 = vld [vmem:[#allocation2 + $0x140] sm:$0xff]
    %v251 = vld [vmem:[#allocation2 + $0x148] sm:$0xff]
    %v252 = vld [vmem:[#allocation2 + $0x150] sm:$0xff]
    %v253 = vld [vmem:[#allocation2 + $0x198] sm:$0xff]
    %254 = vmatprep.subr.mxu0 0.0
    %255 = vmatpush1.msra.mxu0 %v237
    %256 = vmatprep.subr.mxu0 0.0
    %257 = vmatpush1.msra.mxu0 %v238
    %258 = vmatprep.subr.mxu0 0.0
    %259 = vmatpush1.msra.mxu0 %v239
    %260 = vmatprep.subr.mxu0 0.0
    %261 = vmatpush1.msra.mxu0 %v240
    %262 = vmatprep.subr.mxu0 0.0
    %263 = vmatpush1.msra.mxu0 %v241
    %264 = vmatprep.subr.mxu0 0.0
    %265 = vmatpush1.msra.mxu0 %v242
    %266 = vmatprep.subr.mxu0 0.0
    %267 = vmatpush1.msra.mxu0 %v243
    %268 = vmatprep.subr.mxu0 0.0
    %269 = vmatpush1.msra.mxu0 %v244
    %270 = vmatprep.subr.mxu0 0.0
    %271 = vmatpush1.msra.mxu0 %v245
    %272 = vmatprep.subr.mxu0 0.0
    %273 = vmatpush1.msra.mxu0 %v246
    %274 = vmatprep.subr.mxu0 0.0
    %275 = vmatpush1.msra.mxu0 %v247
    %276 = vmatprep.subr.mxu0 0.0
    %277 = vmatpush1.msra.mxu0 %v248
    %278 = vmatprep.subr.mxu0 0.0
    %279 = vmatpush1.msra.mxu0 %v249
    %280 = vmatprep.subr.mxu0 0.0
    %281 = vmatpush1.msra.mxu0 %v250
    %282 = vmatprep.subr.mxu0 0.0
    %283 = vmatpush1.msra.mxu0 %v251
    %284 = vmatprep.subr.mxu0 0.0
    %285 = vmatpush1.msra.mxu0 %v252
    %286 = vmatprep.subr.mxu0 0.0
    %287 = vmatpush1.msra.mxu0 0.0
    %288 = vmatprep.subr.mxu0 0.0
    %289 = vmatpush1.msra.mxu0 0.0
    %290 = vmatprep.subr.mxu0 0.0
    %291 = vmatpush1.msra.mxu0 0.0
    %292 = vmatprep.subr.mxu0 0.0
    %293 = vmatpush1.msra.mxu0 0.0
    %294 = vmatprep.subr.mxu0 0.0
    %295 = vmatpush1.msra.mxu0 0.0
    %296 = vmatprep.subr.mxu0 0.0
    %297 = vmatpush1.msra.mxu0 0.0
    %298 = vmatprep.subr.mxu0 0.0
    %299 = vmatpush1.msra.mxu0 0.0
    %300 = vmatprep.subr.mxu0 0.0
    %301 = vmatpush1.msra.mxu0 0.0
    %302 = vmatprep.subr.mxu0 0.0
    %303 = vmatpush1.msra.mxu0 0.0
    %304 = vmatprep.subr.mxu0 0.0
    %305 = vmatpush1.msra.mxu0 0.0
    %306 = vmatprep.subr.mxu0 0.0
    %307 = vmatpush1.msra.mxu0 0.0
    %308 = vmatprep.subr.mxu0 0.0
    %309 = vmatpush1.msra.mxu0 0.0
    %310 = vmatprep.subr.mxu0 0.0
    %311 = vmatpush1.msra.mxu0 0.0
    %312 = vmatprep.subr.mxu0 0.0
    %313 = vmatpush1.msra.mxu0 0.0
    %314 = vmatprep.subr.mxu0 0.0
    %315 = vmatpush1.msra.mxu0 0.0
    %316 = vmatprep.subr.mxu0 0.0
    %317 = vmatpush1.msra.mxu0 0.0
    %318 = vmatprep.mubr.f32.mxu0 0.0
    %319 = vmatmul.mubr.f32.gmra.mrb[0].mxu0 %v236
    %v320 = vpop.f32.mrb[0].mxu0
    %v321 = vadd.f32 %v253, %v320
    %v322 = vpop.f32.mrb[0].mxu0
    %323 = vdwg.mxu0
    %v324 = vadd.f32 %v153, %v321
    %v325 = vsel %vm125, %v324, 0.0
    %326 = vadd.xlane.f32.xlu0 %v325
    %v327 = vpop.xlane.xlu0 %326
    %v328 = vmul.f32 %v327, %v129
    %v329 = vmul.f32 %v324, %v324
    %v330 = vsel %vm125, %v329, 0.0
    %331 = vadd.xlane.f32.xlu0 %v330
    %v332 = vpop.xlane.xlu0 %331
    %v333 = vmul.f32 %v332, %v129
    %v334 = vsub.f32 %v324, %v328
    %v335 = vmul.f32 %v328, %v328
    %v336 = vsub.f32 %v333, %v335
    %v337 = vadd.f32 %v336, 1e-05
    %v338 = vrsqrt.pop %v337
    %v339 = vmul.f32 %v334, %v338
    %v340 = vld [vmem:[#allocation2 + $0x190] sm:$0xff]
    %342 = vrot.lane.b32.xlu0 %v340, 64
    %v343 = vpop.permute.xlu0 %342
    %v345 = vmul.f32 %v339, %v343
    %347 = vrot.lane.b32.xlu0 %v253, 64
    %v348 = vpop.permute.xlu0 %347
    %v350 = vadd.f32 %v345, %v348
    %v351 = vld [vmem:[#allocation2 + $0x158] sm:$0xff]
    %v352 = vld [vmem:[#allocation2 + $0x160] sm:$0xff]
    %v353 = vld [vmem:[#allocation2 + $0x168] sm:$0xff]
    %v354 = vld [vmem:[#allocation2 + $0x170] sm:$0xff]
    %v355 = vld [vmem:[#allocation2 + $0x178] sm:$0xff]
    %v356 = vld [vmem:[#allocation2 + $0x180] sm:$0xff]
    %v357 = vld [vmem:[#allocation2 + $0x188] sm:$0xff]
    %v358 = vld [vmem:[#allocation2 + $0x1a8] sm:$0xff]
    %v360 = vsel %vm125, %v350, 0
    %362 = vmatprep.subr.mxu0 0.0
    %363 = vmatpush1.msra.mxu0 %v351
    %364 = vmatprep.subr.mxu0 0.0
    %365 = vmatpush1.msra.mxu0 %v352
    %366 = vmatprep.subr.mxu0 0.0
    %367 = vmatpush1.msra.mxu0 %v353
    %368 = vmatprep.subr.mxu0 0.0
    %369 = vmatpush1.msra.mxu0 %v354
    %370 = vmatprep.subr.mxu0 0.0
    %371 = vmatpush1.msra.mxu0 %v355
    %372 = vmatprep.subr.mxu0 0.0
    %373 = vmatpush1.msra.mxu0 %v356
    %374 = vmatprep.subr.mxu0 0.0
    %375 = vmatpush1.msra.mxu0 %v357
    %376 = vmatprep.subr.mxu0 0.0
    %377 = vmatpush1.msra.mxu0 %v340
    %378 = vmatprep.subr.mxu0 0.0
    %379 = vmatpush1.msra.mxu0 0.0
    %380 = vmatprep.subr.mxu0 0.0
    %381 = vmatpush1.msra.mxu0 0.0
    %382 = vmatprep.subr.mxu0 0.0
    %383 = vmatpush1.msra.mxu0 0.0
    %384 = vmatprep.subr.mxu0 0.0
    %385 = vmatpush1.msra.mxu0 0.0
    %386 = vmatprep.subr.mxu0 0.0
    %387 = vmatpush1.msra.mxu0 0.0
    %388 = vmatprep.subr.mxu0 0.0
    %389 = vmatpush1.msra.mxu0 0.0
    %390 = vmatprep.subr.mxu0 0.0
    %391 = vmatpush1.msra.mxu0 0.0
    %392 = vmatprep.subr.mxu0 0.0
    %393 = vmatpush1.msra.mxu0 0.0
    %394 = vmatprep.subr.mxu0 0.0
    %395 = vmatpush1.msra.mxu0 0.0
    %396 = vmatprep.subr.mxu0 0.0
    %397 = vmatpush1.msra.mxu0 0.0
    %398 = vmatprep.subr.mxu0 0.0
    %399 = vmatpush1.msra.mxu0 0.0
    %400 = vmatprep.subr.mxu0 0.0
    %401 = vmatpush1.msra.mxu0 0.0
    %402 = vmatprep.subr.mxu0 0.0
    %403 = vmatpush1.msra.mxu0 0.0
    %404 = vmatprep.subr.mxu0 0.0
    %405 = vmatpush1.msra.mxu0 0.0
    %406 = vmatprep.subr.mxu0 0.0
    %407 = vmatpush1.msra.mxu0 0.0
    %408 = vmatprep.subr.mxu0 0.0
    %409 = vmatpush1.msra.mxu0 0.0
    %410 = vmatprep.subr.mxu0 0.0
    %411 = vmatpush1.msra.mxu0 0.0
    %412 = vmatprep.subr.mxu0 0.0
    %413 = vmatpush1.msra.mxu0 0.0
    %414 = vmatprep.subr.mxu0 0.0
    %415 = vmatpush1.msra.mxu0 0.0
    %416 = vmatprep.subr.mxu0 0.0
    %417 = vmatpush1.msra.mxu0 0.0
    %418 = vmatprep.subr.mxu0 0.0
    %419 = vmatpush1.msra.mxu0 0.0
    %420 = vmatprep.subr.mxu0 0.0
    %421 = vmatpush1.msra.mxu0 0.0
    %422 = vmatprep.subr.mxu0 0.0
    %423 = vmatpush1.msra.mxu0 0.0
    %424 = vmatprep.subr.mxu0 0.0
    %425 = vmatpush1.msra.mxu0 0.0
    %426 = vmatprep.mubr.f32.mxu0 0.0
    %427 = vmatmul.mubr.f32.gmra.mrb[0].mxu0 %v360
    %v428 = vpop.f32.mrb[0].mxu0
    %v429 = vadd.f32 %v358, %v428
    %v430 = vpop.f32.mrb[0].mxu0
    %431 = vdwg.mxu0
    %v432 = vsel %vm125, %v429, 0.0
    %433 = vadd.xlane.f32.xlu0 %v432
    %v434 = vpop.xlane.xlu0 %433
    %v435 = vmul.f32 %v434, %v129
    %v436 = vmul.f32 %v429, %v429
    %v437 = vsel %vm125, %v436, 0.0
    %438 = vadd.xlane.f32.xlu0 %v437
    %v439 = vpop.xlane.xlu0 %438
    %v440 = vmul.f32 %v439, %v129
    %v441 = vsub.f32 %v429, %v435
    %v442 = vmul.f32 %v435, %v435
    %v443 = vsub.f32 %v440, %v442
    %v444 = vadd.f32 %v443, 1e-05
    %v445 = vrsqrt.pop %v444
    %v446 = vmul.f32 %v441, %v445
    %v447 = vld [vmem:[#allocation2 + $0x1a0] sm:$0xff]
    %449 = vrot.lane.b32.xlu0 %v447, 64
    %v450 = vpop.permute.xlu0 %449
    %v452 = vmul.f32 %v446, %v450
    %454 = vrot.lane.b32.xlu0 %v358, 64
    %v455 = vpop.permute.xlu0 %454
    %v457 = vadd.f32 %v452, %v455
    %v458 = vld [vmem:[#allocation2 + $0x40] sm:$0xff]
    %v459 = vld [vmem:[#allocation2 + $0x48] sm:$0xff]
    %v460 = vld [vmem:[#allocation2 + $0x50] sm:$0xff]
    %v461 = vld [vmem:[#allocation2 + $0x58] sm:$0xff]
    %v462 = vld [vmem:[#allocation2 + $0x60] sm:$0xff]
    %v463 = vld [vmem:[#allocation2 + $0x68] sm:$0xff]
    %v464 = vld [vmem:[#allocation2 + $0x70] sm:$0xff]
    %v465 = vld [vmem:[#allocation2 + $0x78] sm:$0xff]
    %v466 = vld [vmem:[#allocation2 + $0xc8] sm:$0xff]
    %v468 = vsel %vm125, %v457, 0
    %470 = vmatprep.subr.mxu0 0.0
    %471 = vmatpush1.msra.mxu0 %v458
    %472 = vmatprep.subr.mxu0 0.0
    %473 = vmatpush1.msra.mxu0 %v459
    %474 = vmatprep.subr.mxu0 0.0
    %475 = vmatpush1.msra.mxu0 %v460
    %476 = vmatprep.subr.mxu0 0.0
    %477 = vmatpush1.msra.mxu0 %v461
    %478 = vmatprep.subr.mxu0 0.0
    %479 = vmatpush1.msra.mxu0 %v462
    %480 = vmatprep.subr.mxu0 0.0
    %481 = vmatpush1.msra.mxu0 %v463
    %482 = vmatprep.subr.mxu0 0.0
    %483 = vmatpush1.msra.mxu0 %v464
    %484 = vmatprep.subr.mxu0 0.0
    %485 = vmatpush1.msra.mxu0 %v465
    %486 = vmatprep.subr.mxu0 0.0
    %487 = vmatpush1.msra.mxu0 0.0
    %488 = vmatprep.subr.mxu0 0.0
    %489 = vmatpush1.msra.mxu0 0.0
    %490 = vmatprep.subr.mxu0 0.0
    %491 = vmatpush1.msra.mxu0 0.0
    %492 = vmatprep.subr.mxu0 0.0
    %493 = vmatpush1.msra.mxu0 0.0
    %494 = vmatprep.subr.mxu0 0.0
    %495 = vmatpush1.msra.mxu0 0.0
    %496 = vmatprep.subr.mxu0 0.0
    %497 = vmatpush1.msra.mxu0 0.0
    %498 = vmatprep.subr.mxu0 0.0
    %499 = vmatpush1.msra.mxu0 0.0
    %500 = vmatprep.subr.mxu0 0.0
    %501 = vmatpush1.msra.mxu0 0.0
    %502 = vmatprep.subr.mxu0 0.0
    %503 = vmatpush1.msra.mxu0 0.0
    %504 = vmatprep.subr.mxu0 0.0
    %505 = vmatpush1.msra.mxu0 0.0
    %506 = vmatprep.subr.mxu0 0.0
    %507 = vmatpush1.msra.mxu0 0.0
    %508 = vmatprep.subr.mxu0 0.0
    %509 = vmatpush1.msra.mxu0 0.0
    %510 = vmatprep.subr.mxu0 0.0
    %511 = vmatpush1.msra.mxu0 0.0
    %512 = vmatprep.subr.mxu0 0.0
    %513 = vmatpush1.msra.mxu0 0.0
    %514 = vmatprep.subr.mxu0 0.0
    %515 = vmatpush1.msra.mxu0 0.0
    %516 = vmatprep.subr.mxu0 0.0
    %517 = vmatpush1.msra.mxu0 0.0
    %518 = vmatprep.subr.mxu0 0.0
    %519 = vmatpush1.msra.mxu0 0.0
    %520 = vmatprep.subr.mxu0 0.0
    %521 = vmatpush1.msra.mxu0 0.0
    %522 = vmatprep.subr.mxu0 0.0
    %523 = vmatpush1.msra.mxu0 0.0
    %524 = vmatprep.subr.mxu0 0.0
    %525 = vmatpush1.msra.mxu0 0.0
    %526 = vmatprep.subr.mxu0 0.0
    %527 = vmatpush1.msra.mxu0 0.0
    %528 = vmatprep.subr.mxu0 0.0
    %529 = vmatpush1.msra.mxu0 0.0
    %530 = vmatprep.subr.mxu0 0.0
    %531 = vmatpush1.msra.mxu0 0.0
    %532 = vmatprep.subr.mxu0 0.0
    %533 = vmatpush1.msra.mxu0 0.0
    %534 = vmatprep.mubr.f32.mxu0 0.0
    %535 = vmatmul.mubr.f32.gmra.mrb[0].mxu0 %v468
    %v536 = vpop.f32.mrb[0].mxu0
    %v537 = vadd.f32 %v466, %v536
    %v538 = vpop.f32.mrb[0].mxu0
    %539 = vdwg.mxu0
    %v540 = vmax.f32 %v537, 0.0
    %557 = vrot.lane.b32.xlu0 %v237, 64
    %v558 = vpop.permute.xlu0 %557
    %559 = vrot.lane.b32.xlu0 %v238, 64
    %v560 = vpop.permute.xlu0 %559
    %561 = vrot.lane.b32.xlu0 %v239, 64
    %v562 = vpop.permute.xlu0 %561
    %563 = vrot.lane.b32.xlu0 %v240, 64
    %v564 = vpop.permute.xlu0 %563
    %565 = vrot.lane.b32.xlu0 %v241, 64
    %v566 = vpop.permute.xlu0 %565
    %567 = vrot.lane.b32.xlu0 %v242, 64
    %v568 = vpop.permute.xlu0 %567
    %569 = vrot.lane.b32.xlu0 %v243, 64
    %v570 = vpop.permute.xlu0 %569
    %571 = vrot.lane.b32.xlu0 %v244, 64
    %v572 = vpop.permute.xlu0 %571
    %573 = vrot.lane.b32.xlu0 %v245, 64
    %v574 = vpop.permute.xlu0 %573
    %575 = vrot.lane.b32.xlu0 %v246, 64
    %v576 = vpop.permute.xlu0 %575
    %577 = vrot.lane.b32.xlu0 %v247, 64
    %v578 = vpop.permute.xlu0 %577
    %579 = vrot.lane.b32.xlu0 %v248, 64
    %v580 = vpop.permute.xlu0 %579
    %581 = vrot.lane.b32.xlu0 %v249, 64
    %v582 = vpop.permute.xlu0 %581
    %583 = vrot.lane.b32.xlu0 %v250, 64
    %v584 = vpop.permute.xlu0 %583
    %585 = vrot.lane.b32.xlu0 %v251, 64
    %v586 = vpop.permute.xlu0 %585
    %587 = vrot.lane.b32.xlu0 %v252, 64
    %v588 = vpop.permute.xlu0 %587
    %605 = vmatprep.subr.mxu0 0.0
    %606 = vmatpush1.msra.mxu0 %v558
    %607 = vmatprep.subr.mxu0 0.0
    %608 = vmatpush1.msra.mxu0 %v560
    %609 = vmatprep.subr.mxu0 0.0
    %610 = vmatpush1.msra.mxu0 %v562
    %611 = vmatprep.subr.mxu0 0.0
    %612 = vmatpush1.msra.mxu0 %v564
    %613 = vmatprep.subr.mxu0 0.0
    %614 = vmatpush1.msra.mxu0 %v566
    %615 = vmatprep.subr.mxu0 0.0
    %616 = vmatpush1.msra.mxu0 %v568
    %617 = vmatprep.subr.mxu0 0.0
    %618 = vmatpush1.msra.mxu0 %v570
    %619 = vmatprep.subr.mxu0 0.0
    %620 = vmatpush1.msra.mxu0 %v572
    %621 = vmatprep.subr.mxu0 0.0
    %622 = vmatpush1.msra.mxu0 %v574
    %623 = vmatprep.subr.mxu0 0.0
    %624 = vmatpush1.msra.mxu0 %v576
    %625 = vmatprep.subr.mxu0 0.0
    %626 = vmatpush1.msra.mxu0 %v578
    %627 = vmatprep.subr.mxu0 0.0
    %628 = vmatpush1.msra.mxu0 %v580
    %629 = vmatprep.subr.mxu0 0.0
    %630 = vmatpush1.msra.mxu0 %v582
    %631 = vmatprep.subr.mxu0 0.0
    %632 = vmatpush1.msra.mxu0 %v584
    %633 = vmatprep.subr.mxu0 0.0
    %634 = vmatpush1.msra.mxu0 %v586
    %635 = vmatprep.subr.mxu0 0.0
    %636 = vmatpush1.msra.mxu0 %v588
    %637 = vmatprep.subr.mxu0 0.0
    %638 = vmatpush1.msra.mxu0 0.0
    %639 = vmatprep.subr.mxu0 0.0
    %640 = vmatpush1.msra.mxu0 0.0
    %641 = vmatprep.subr.mxu0 0.0
    %642 = vmatpush1.msra.mxu0 0.0
    %643 = vmatprep.subr.mxu0 0.0
    %644 = vmatpush1.msra.mxu0 0.0
    %645 = vmatprep.subr.mxu0 0.0
    %646 = vmatpush1.msra.mxu0 0.0
    %647 = vmatprep.subr.mxu0 0.0
    %648 = vmatpush1.msra.mxu0 0.0
    %649 = vmatprep.subr.mxu0 0.0
    %650 = vmatpush1.msra.mxu0 0.0
    %651 = vmatprep.subr.mxu0 0.0
    %652 = vmatpush1.msra.mxu0 0.0
    %653 = vmatprep.subr.mxu0 0.0
    %654 = vmatpush1.msra.mxu0 0.0
    %655 = vmatprep.subr.mxu0 0.0
    %656 = vmatpush1.msra.mxu0 0.0
    %657 = vmatprep.subr.mxu0 0.0
    %658 = vmatpush1.msra.mxu0 0.0
    %659 = vmatprep.subr.mxu0 0.0
    %660 = vmatpush1.msra.mxu0 0.0
    %661 = vmatprep.subr.mxu0 0.0
    %662 = vmatpush1.msra.mxu0 0.0
    %663 = vmatprep.subr.mxu0 0.0
    %664 = vmatpush1.msra.mxu0 0.0
    %665 = vmatprep.subr.mxu0 0.0
    %666 = vmatpush1.msra.mxu0 0.0
    %667 = vmatprep.subr.mxu0 0.0
    %668 = vmatpush1.msra.mxu0 0.0
    %669 = vmatprep.mubr.f32.mxu0 0.0
    %670 = vmatmul.mubr.f32.gmra.mrb[0].mxu0 %v540
    %v671 = vpop.f32.mrb[0].mxu0
    %v672 = vadd.f32 %v447, %v671
    %v673 = vpop.f32.mrb[0].mxu0
    %674 = vdwg.mxu0
    %v675 = vadd.f32 %v457, %v672
    %v676 = vsel %vm125, %v675, 0.0
    %677 = vadd.xlane.f32.xlu0 %v676
    %v678 = vpop.xlane.xlu0 %677
    %v679 = vmul.f32 %v678, %v129
    %v680 = vmul.f32 %v675, %v675
    %v681 = vsel %vm125, %v680, 0.0
    %682 = vadd.xlane.f32.xlu0 %v681
    %v683 = vpop.xlane.xlu0 %682
    %v684 = vmul.f32 %v683, %v129
    %v685 = vsub.f32 %v675, %v679
    %v686 = vmul.f32 %v679, %v679
    %v687 = vsub.f32 %v684, %v686
    %v688 = vadd.f32 %v687, 1e-05
    %v689 = vrsqrt.pop %v688
    %v690 = vmul.f32 %v685, %v689
    %v691 = vld [vmem:[#allocation2 + $0x80] sm:$0xff]
    %v692 = vld [vmem:[#allocation2 + $0x88] sm:$0xff]
    %v693 = vld [vmem:[#allocation2 + $0x90] sm:$0xff]
    %v694 = vld [vmem:[#allocation2 + $0x98] sm:$0xff]
    %v695 = vld [vmem:[#allocation2 + $0xa0] sm:$0xff]
    %v696 = vld [vmem:[#allocation2 + $0xa8] sm:$0xff]
    %v697 = vld [vmem:[#allocation2 + $0xb0] sm:$0xff]
    %v698 = vld [vmem:[#allocation2 + $0xb8] sm:$0xff]
    %v699 = vld [vmem:[#allocation2 + $0xd0] sm:$0xff]
    %v701 = vsel %vm125, %v690, 0
    %703 = vmatprep.subr.mxu0 0.0
    %704 = vmatpush1.msra.mxu0 %v691
    %705 = vmatprep.subr.mxu0 0.0
    %706 = vmatpush1.msra.mxu0 %v692
    %707 = vmatprep.subr.mxu0 0.0
    %708 = vmatpush1.msra.mxu0 %v693
    %709 = vmatprep.subr.mxu0 0.0
    %710 = vmatpush1.msra.mxu0 %v694
    %711 = vmatprep.subr.mxu0 0.0
    %712 = vmatpush1.msra.mxu0 %v695
    %713 = vmatprep.subr.mxu0 0.0
    %714 = vmatpush1.msra.mxu0 %v696
    %715 = vmatprep.subr.mxu0 0.0
    %716 = vmatpush1.msra.mxu0 %v697
    %717 = vmatprep.subr.mxu0 0.0
    %718 = vmatpush1.msra.mxu0 %v698
    %719 = vmatprep.subr.mxu0 0.0
    %720 = vmatpush1.msra.mxu0 0.0
    %721 = vmatprep.subr.mxu0 0.0
    %722 = vmatpush1.msra.mxu0 0.0
    %723 = vmatprep.subr.mxu0 0.0
    %724 = vmatpush1.msra.mxu0 0.0
    %725 = vmatprep.subr.mxu0 0.0
    %726 = vmatpush1.msra.mxu0 0.0
    %727 = vmatprep.subr.mxu0 0.0
    %728 = vmatpush1.msra.mxu0 0.0
    %729 = vmatprep.subr.mxu0 0.0
    %730 = vmatpush1.msra.mxu0 0.0
    %731 = vmatprep.subr.mxu0 0.0
    %732 = vmatpush1.msra.mxu0 0.0
    %733 = vmatprep.subr.mxu0 0.0
    %734 = vmatpush1.msra.mxu0 0.0
    %735 = vmatprep.subr.mxu0 0.0
    %736 = vmatpush1.msra.mxu0 0.0
    %737 = vmatprep.subr.mxu0 0.0
    %738 = vmatpush1.msra.mxu0 0.0
    %739 = vmatprep.subr.mxu0 0.0
    %740 = vmatpush1.msra.mxu0 0.0
    %741 = vmatprep.subr.mxu0 0.0
    %742 = vmatpush1.msra.mxu0 0.0
    %743 = vmatprep.subr.mxu0 0.0
    %744 = vmatpush1.msra.mxu0 0.0
    %745 = vmatprep.subr.mxu0 0.0
    %746 = vmatpush1.msra.mxu0 0.0
    %747 = vmatprep.subr.mxu0 0.0
    %748 = vmatpush1.msra.mxu0 0.0
    %749 = vmatprep.subr.mxu0 0.0
    %750 = vmatpush1.msra.mxu0 0.0
    %751 = vmatprep.subr.mxu0 0.0
    %752 = vmatpush1.msra.mxu0 0.0
    %753 = vmatprep.subr.mxu0 0.0
    %754 = vmatpush1.msra.mxu0 0.0
    %755 = vmatprep.subr.mxu0 0.0
    %756 = vmatpush1.msra.mxu0 0.0
    %757 = vmatprep.subr.mxu0 0.0
    %758 = vmatpush1.msra.mxu0 0.0
    %759 = vmatprep.subr.mxu0 0.0
    %760 = vmatpush1.msra.mxu0 0.0
    %761 = vmatprep.subr.mxu0 0.0
    %762 = vmatpush1.msra.mxu0 0.0
    %763 = vmatprep.subr.mxu0 0.0
    %764 = vmatpush1.msra.mxu0 0.0
    %765 = vmatprep.subr.mxu0 0.0
    %766 = vmatpush1.msra.mxu0 0.0
    %767 = vmatprep.mubr.f32.mxu0 0.0
    %768 = vmatmul.mubr.f32.gmra.mrb[0].mxu0 %v701
    %v769 = vpop.f32.mrb[0].mxu0
    %v770 = vadd.f32 %v699, %v769
    %v771 = vpop.f32.mrb[0].mxu0
    %772 = vdwg.mxu0
    %773 = vst [vmem:[%s2] sm:$0xff] %v770
    // Predicated region
    $region14: #{transformer_forward.1} parent=1 // pred_check
      _
    $region15: #{transformer_forward.1} parent=1 // pred_check_branch
      %775 = sbr.rel (0) target = $region17
    $region16: #{transformer_forward.1} parent=1 // pred_region
      _
    $region17: #{transformer_forward.1} parent=1 // pred_fallthru
      _
    // Predicated region
    $region18: #{transformer_forward.1} parent=1 // pred_check
      _
    $region19: #{transformer_forward.1} parent=1 // pred_check_branch
      %777 = sbr.rel (0) target = $region21
    $region20: #{transformer_forward.1} parent=1 // pred_region
      _
    $region21: #{transformer_forward.1} parent=1 // pred_fallthru
      _
    %778 = vsyncpa [#allocation3], 1

</llo_original>
